<compile_context>
chip_gen: v6e
topology: v6e:2x2x1
jax: 0.10.0
libtpu: 0.0.40
codegen_flags: <defaults>
</compile_context>

<pallas_src>
import functools

import jax
import jax.numpy as jnp
from jax.experimental import pallas as pl
from jax.experimental.pallas import tpu as pltpu

_LANE = 128


def _round_up(x, m):
    return ((x + m - 1) // m) * m


def _vmem_limit_bytes():
    # Generation-aware scoped-VMEM cap: ~3/4 of physical (v5e/v6e 128 MiB ->
    # 96 MiB, v7x 64 MiB -> 48 MiB), with a conservative fallback.
    try:
        cap = int(pltpu.get_tpu_info().vmem_capacity_bytes)
    except Exception:
        cap = 64 * 1024 * 1024
    return int(min(cap * 3 // 4, 100 * 1024 * 1024))


# ----------------------------------------------------------------------------
# Pallas kernel: shifted-window matmul-accumulate (implicit-GEMM 3-D conv)
# over one output plane x one 128-wide Cout block, with fused BN-bias /
# residual-add / ReLU epilogue.
# ----------------------------------------------------------------------------
def _conv_plane_kernel(*refs, taps, n_a, relu, has_res):
    """refs = [A_0 .. A_{n_a-1}, W, bias, (residual), out]

      A_k  : (rows_a, K_k) f32   one decimated input plane (+ zero guard rows)
      W    : (KK, K, 128)  bf16  BN-folded weights, current Cout block
      bias : (1, 128)      f32   folded BN bias, current Cout block
      res  : (rows, 128)   f32   optional residual (plane layout)
      out  : (rows, 128)   f32
    """
    a_refs = refs[:n_a]
    w_ref = refs[n_a]
    b_ref = refs[n_a + 1]
    res_ref = refs[n_a + 2] if has_res else None
    o_ref = refs[-1]

    rows = o_ref.shape[0]
    acc = jnp.zeros((rows, o_ref.shape[1]), jnp.float32)
    # Unrolled tap loop: each tap is a *static* row shift of a small VMEM plane
    # slab -> one bf16 MXU matmul accumulated in f32.
    for a_i, w_i, shift in taps:
        a = a_refs[a_i][pl.ds(shift, rows), :].astype(jnp.bfloat16)
        acc += jnp.dot(a, w_ref[w_i], preferred_element_type=jnp.float32)

    y = acc + b_ref[...]                       # folded BatchNorm bias (f32)
    if has_res:
        y = y + res_ref[...]                   # fused residual add (f32)
    if relu:
        y = jnp.maximum(y, 0.0)
    o_ref[...] = y.astype(o_ref.dtype)


# ----------------------------------------------------------------------------
# Conv wrapper: geometry, phase decimation, plane layout, pallas_call assembly.
# ----------------------------------------------------------------------------
def conv3d_bn(x, p, relu=True, residual=None):
    """3-D conv + folded BN (+ optional residual add) (+ optional ReLU).

    x: (N, D, H, W, Cin) f32 -> (N, Do, Ho, Wo, Cout) f32.
    """
    N, D, H, W, C = x.shape
    kt, kh, kw = p["ksize"]
    st, sh, sw = p["stride"]
    pt, ph, pw = p["pad"]
    assert st == 1, "X3D uses temporal stride 1 in every backbone conv"
    cout = p["cout"]
    cout_p = p["w"].shape[-1]                  # multiple of 128 (lane dense)
    n_cb = cout_p // _LANE

    # Padded geometry. H/W padding is rounded up to the stride so every
    # decimation phase has identical (Hq, Wq) extents; the extra rows are
    # zeros and only feed garbage output rows that are cropped below.
    Dp = D + 2 * pt
    Hp, Wp = H + 2 * ph, W + 2 * pw
    Hpu, Wpu = _round_up(Hp, sh), _round_up(Wp, sw)
    Do = Dp - kt + 1
    Ho = (Hp - kh) // sh + 1
    Wo = (Wp - kw) // sw + 1
    Hq, Wq = Hpu // sh, Wpu // sw

    rows_out = _round_up(Ho * Wq, 8)           # output rows per (n, d) plane

    xp = jnp.pad(x, ((0, 0), (pt, pt), (ph, Hpu - H - ph),
                     (pw, Wpu - W - pw), (0, 0)))

    fold = (C <= 8 and kt * kh * kw > 1)       # stem: fold all taps into K
    if fold:
        # Full im2col: K = kt*kh*kw*C (81 for the RGB stem) -> one MXU matmul
        # per output plane instead of 27 K=3 matmuls.
        kk = kt * kh * kw
        k_dim = kk * C
        k_pad = _round_up(k_dim, _LANE)
        cols = []
        for it in range(kt):
            for ih in range(kh):
                for iw in range(kw):
                    cols.append(xp[:, it:it + Do,
                                   ih:ih + (Ho - 1) * sh + 1:sh,
                                   iw:iw + (Wo - 1) * sw + 1:sw, :])
        col = jnp.concatenate(cols, axis=-1)                 # (N,Do,Ho,Wo,K)
        col = jnp.pad(col, ((0, 0), (0, 0), (0, 0),
                            (0, Wq - Wo), (0, k_pad - k_dim)))
        col = col.reshape(N * Do, Ho * Wq, k_pad)
        col = jnp.pad(col, ((0, 0), (0, rows_out - Ho * Wq), (0, 0)))
        a_list = [col.reshape(N * Do * rows_out, k_pad)]
        rows_a = rows_out
        taps = ((0, 0, 0),)
        w_mat = jnp.pad(p["w"].reshape(k_dim, cout_p),
                        ((0, k_pad - k_dim), (0, 0))).reshape(1, k_pad, cout_p)
        a_specs = [pl.BlockSpec((rows_a, k_pad),
                                lambda n, d, j: (n * Do + d, 0))]
    else:
        # Implicit GEMM: every kernel tap (it, ih, iw) is a static row shift of
        # a phase-decimated input *plane*; the temporal halo (it) is expressed
        # by passing the phase slab kt times with a shifted plane index_map.
        phase_ids = sorted({(ih % sh, iw % sw)
                            for ih in range(kh) for iw in range(kw)})
        phase_pos = {pp: i for i, pp in enumerate(phase_ids)}
        n_ph = len(phase_ids)
        taps = []
        max_shift = 0
        for it in range(kt):
            for ih in range(kh):
                for iw in range(kw):
                    s = (ih // sh) * Wq + (iw // sw)
                    taps.append((it * n_ph + phase_pos[(ih % sh, iw % sw)],
                                 it * kh * kw + ih * kw + iw, s))
                    max_shift = max(max_shift, s)
        taps = tuple(taps)
        # Zero guard rows so shifted reads issued for the (cropped) garbage
        # output rows stay inside the plane slab.
        rows_a = _round_up(Hq * Wq + max_shift + 8, 8)

        slabs = []
        for (a0, b0) in phase_ids:
            xq = xp[:, :, a0::sh, b0::sw, :]             # (N, Dp, Hq, Wq, C)
            xq = xq.reshape(N * Dp, Hq * Wq, C)
            xq = jnp.pad(xq, ((0, 0), (0, rows_a - Hq * Wq), (0, 0)))
            slabs.append(xq.reshape(N * Dp * rows_a, C))

        a_list, a_specs = [], []
        for it in range(kt):
            for ph_i in range(n_ph):
                a_list.append(slabs[ph_i])
                a_specs.append(pl.BlockSpec(
                    (rows_a, C),
                    lambda n, d, j, it=it: (n * Dp + d + it, 0)))
        w_mat = p["w"]                                   # (KK, Cin, Cout_p) bf16

    args = list(a_list) + [w_mat, p["bias"]]
    in_specs = list(a_specs) + [
        pl.BlockSpec(tuple(w_mat.shape[:2]) + (_LANE,),
                     lambda n, d, j: (0, 0, j)),
        pl.BlockSpec((1, _LANE), lambda n, d, j: (0, j)),
    ]

    has_res = residual is not None
    if has_res:
        assert residual.shape == (N, Do, Ho, Wo, cout), (
            residual.shape, (N, Do, Ho, Wo, cout))
        r = jnp.pad(residual.astype(jnp.float32),
                    ((0, 0), (0, 0), (0, 0), (0, Wq - Wo), (0, cout_p - cout)))
        r = r.reshape(N * Do, Ho * Wq, cout_p)
        r = jnp.pad(r, ((0, 0), (0, rows_out - Ho * Wq), (0, 0)))
        args.append(r.reshape(N * Do * rows_out, cout_p))
        in_specs.append(pl.BlockSpec((rows_out, _LANE),
                                     lambda n, d, j: (n * Do + d, j)))

    kernel = functools.partial(_conv_plane_kernel, taps=taps,
                               n_a=len(a_list), relu=relu, has_res=has_res)

    out = pl.pallas_call(
        kernel,
        out_shape=jax.ShapeDtypeStruct((N * Do * rows_out, cout_p), jnp.float32),
        grid=(N, Do, n_cb),
        in_specs=in_specs,
        out_specs=pl.BlockSpec((rows_out, _LANE),
                               lambda n, d, j: (n * Do + d, j)),
        compiler_params=pltpu.CompilerParams(
            dimension_semantics=("parallel", "parallel", "parallel"),
            vmem_limit_bytes=_vmem_limit_bytes()),
    )(*args)

    out = out.reshape(N * Do, rows_out, cout_p)[:, :Ho * Wq, :cout]
    out = out.reshape(N, Do, Ho, Wq, cout)[:, :, :, :Wo, :]
    return out


# ----------------------------------------------------------------------------
# Pure-XLA reference (numerical self-check only; uses the same bf16 operands).
# ----------------------------------------------------------------------------
def _reference_conv_bn(x, p, relu=True, residual=None):
    kt, kh, kw = p["ksize"]
    cin = p["w"].shape[1]
    cout = p["cout"]
    w = p["w"][:, :, :cout].astype(jnp.bfloat16).reshape(kt, kh, kw, cin, cout)
    pt, ph, pw = p["pad"]
    y = jax.lax.conv_general_dilated(
        x.astype(jnp.bfloat16), w,
        window_strides=p["stride"],
        padding=[(pt, pt), (ph, ph), (pw, pw)],
        dimension_numbers=("NDHWC", "DHWIO", "NDHWC"),
        preferred_element_type=jnp.float32)
    y = y + p["bias"][0, :cout].reshape(1, 1, 1, 1, cout)
    if residual is not None:
        y = y + residual.astype(jnp.float32)
    if relu:
        y = jnp.maximum(y, 0.0)
    return y


# ----------------------------------------------------------------------------
# Deterministic parameter construction (synthetic, no checkpoint load)
# ----------------------------------------------------------------------------
class _ParamGen:
    def __init__(self, seed=0):
        self.key = jax.random.PRNGKey(seed)

    def next(self):
        self.key, sub = jax.random.split(self.key)
        return sub


def make_conv_bn(pg, cin, cout, ksize, stride, pad):
    kt, kh, kw = ksize
    kk = kt * kh * kw
    fan_in = cin * kk
    w = jax.random.normal(pg.next(), (cout, cin, kt, kh, kw), jnp.float32)
    w = w * jnp.sqrt(2.0 / fan_in)                       # kaiming-style init
    # (Cout, Cin, kt, kh, kw) -> (kt*kh*kw, Cin, Cout): row k matches the
    # (it, ih, iw) tap order enumerated in conv3d_bn.
    w3 = jnp.transpose(w, (2, 3, 4, 1, 0)).reshape(kk, cin, cout)
    gamma = 1.0 + 0.1 * jax.random.normal(pg.next(), (cout,), jnp.float32)
    beta = 0.1 * jax.random.normal(pg.next(), (cout,), jnp.float32)
    mean = 0.05 * jax.random.normal(pg.next(), (cout,), jnp.float32)
    var = 1.0 + 0.1 * jax.random.uniform(pg.next(), (cout,), jnp.float32)
    inv = gamma / jnp.sqrt(var + 1e-5)
    w3 = w3 * inv.reshape(1, 1, cout)                    # fold BN scale
    bias = (beta - mean * inv).reshape(1, cout)
    cout_p = _round_up(cout, _LANE)
    # Lane-dense Cout padding: padded channels have zero weights/bias, so the
    # extra output columns are zero and are cropped after the pallas_call.
    w3 = jnp.pad(w3, ((0, 0), (0, 0), (0, cout_p - cout))).astype(jnp.bfloat16)
    bias = jnp.pad(bias, ((0, 0), (0, cout_p - cout))).astype(jnp.float32)
    return dict(w=w3, bias=bias, cout=cout, ksize=ksize, stride=stride, pad=pad)


def make_res_block(pg, cin, cout, spatial_stride):
    s = (1, spatial_stride, spatial_stride)
    blk = dict(
        conv_a=make_conv_bn(pg, cin, cout, (3, 3, 3), s, (1, 1, 1)),
        conv_b=make_conv_bn(pg, cout, cout, (3, 3, 3), (1, 1, 1), (1, 1, 1)),
        down=None,
    )
    if spatial_stride != 1 or cin != cout:
        blk["down"] = make_conv_bn(pg, cin, cout, (1, 1, 1), s, (0, 0, 0))
    return blk


def apply_res_block(x, blk):
    res = x if blk["down"] is None else conv3d_bn(x, blk["down"], relu=False)
    out = conv3d_bn(x, blk["conv_a"], relu=True)
    # conv_b: BN bias + residual add + ReLU fused into the matmul epilogue.
    return conv3d_bn(out, blk["conv_b"], relu=True, residual=res)


# Depth table from the spec; "XS" is a small demo depth used here.
_N_CONV_X3D = {"S": (3, 5, 11, 7), "M": (3, 5, 11, 7), "XL": (5, 10, 25, 15),
               "XS": (1, 1, 1, 1)}


def build_x3d_params(depth="XS", in_channels=3, base_channels=16,
                     expansion_ratio=2.0, seed=0):
    pg = _ParamGen(seed)
    n_blocks = _N_CONV_X3D[depth]
    chans = [base_channels, base_channels * 2, base_channels * 4, base_channels * 8]
    strides = [1, 2, 2, 2]
    params = dict(
        stem=make_conv_bn(pg, in_channels, base_channels,
                          (3, 3, 3), (1, 2, 2), (1, 1, 1)),
        stages=[],
    )
    cin = base_channels
    for cout, nblk, stride in zip(chans, n_blocks, strides):
        blocks = []
        for b in range(nblk):
            blocks.append(make_res_block(pg, cin, cout, stride if b == 0 else 1))
            cin = cout
        params["stages"].append(blocks)
    c_last = int(chans[-1] * expansion_ratio)
    params["last_conv"] = make_conv_bn(pg, chans[-1], c_last,
                                       (1, 1, 1), (1, 1, 1), (0, 0, 0))
    return params


# ----------------------------------------------------------------------------
# Forward pass (mirrors X3D.forward: conv1 .. conv5, last_conv + BN + ReLU)
# ----------------------------------------------------------------------------
def x3d_forward(params, x):
    if isinstance(x, list):
        x = x[0]
    elif isinstance(x, dict):
        x = x["video"]
    # NCDHW (PyTorch) -> NDHWC (kernel layout)
    x = jnp.transpose(x, (0, 2, 3, 4, 1)).astype(jnp.float32)
    x = conv3d_bn(x, params["stem"], relu=True)          # conv1 (stem)
    for stage in params["stages"]:                       # conv2 .. conv5
        for blk in stage:
            x = apply_res_block(x, blk)
    x = conv3d_bn(x, params["last_conv"], relu=True)     # last_conv + BN + ReLU
    # back to NCDHW to match the PyTorch module's output convention
    return jnp.transpose(x, (0, 4, 1, 2, 3)).astype(jnp.float32)


if __name__ == "__main__":
    key = jax.random.PRNGKey(0)
    # (N, C, T, H, W) video clip, small shapes
    x = jax.random.normal(key, (2, 3, 8, 16, 16), dtype=jnp.float32)

    params = build_x3d_params(depth="XS", in_channels=3, base_channels=16,
                              expansion_ratio=2.0, seed=0)

    # --- numerical self-check of the implicit-GEMM conv kernel ---------------
    xc = jnp.transpose(x, (0, 2, 3, 4, 1)).astype(jnp.float32)
    got = conv3d_bn(xc, params["stem"], relu=True)            # stride-2, im2col
    want = _reference_conv_bn(xc, params["stem"], relu=True)
    assert bool(jnp.allclose(got, want, rtol=5e-3, atol=5e-3)), (
        "stem mismatch", float(jnp.max(jnp.abs(got - want))))

    blk = params["stages"][1][0]                              # stride-2 block
    ya = conv3d_bn(got, blk["conv_a"], relu=True)
    want_a = _reference_conv_bn(got, blk["conv_a"], relu=True)
    assert bool(jnp.allclose(ya, want_a, rtol=5e-3, atol=5e-3)), (
        "conv_a mismatch", float(jnp.max(jnp.abs(ya - want_a))))

    res = conv3d_bn(got, blk["down"], relu=False)
    got_b = conv3d_bn(ya, blk["conv_b"], relu=True, residual=res)  # fused resid
    want_b = _reference_conv_bn(ya, blk["conv_b"], relu=True, residual=res)
    assert bool(jnp.allclose(got_b, want_b, rtol=5e-3, atol=5e-3)), (
        "block mismatch", float(jnp.max(jnp.abs(got_b - want_b))))

    # --- full forward ---------------------------------------------------------
    fwd = jax.jit(functools.partial(x3d_forward, params))
    out = jax.block_until_ready(fwd({"video": x}))

    assert out.shape == (2, 256, 8, 1, 1), out.shape
    assert bool(jnp.all(jnp.isfinite(out)))
    print("KERNEL_OK")
</pallas_src>

<mosaic_0001>
module attributes {stable_mosaic.version = 11 : i64} {
  func.func @_conv_plane_kernel(%arg0: i32, %arg1: i32, %arg2: i32, %arg3: memref<72x128xf32, #tpu.memory_space<vmem>>, %arg4: memref<1x128x128xbf16, #tpu.memory_space<vmem>>, %arg5: memref<1x128xf32, #tpu.memory_space<vmem>>, %arg6: memref<72x128xf32, #tpu.memory_space<vmem>>) attributes {dimension_semantics = [#tpu.dimension_semantics<parallel>, #tpu.dimension_semantics<parallel>, #tpu.dimension_semantics<parallel>], iteration_bounds = array<i64: 2, 8, 1>, scalar_prefetch = 0 : i64, scratch_operands = 0 : i64, tpu.core_type = #tpu.core_type<tc>, window_params = [{transform_indices = @transform_0, window_bounds = array<i64: 72, 128>}, {transform_indices = @transform_1, window_bounds = array<i64: 1, 128, 128>}, {transform_indices = @transform_2, window_bounds = array<i64: 1, 128>}, {transform_indices = @transform_3, window_bounds = array<i64: 72, 128>}]} {
    %cst = arith.constant 0.000000e+00 : f32
    %0 = vector.broadcast %cst : f32 to vector<72x128xf32>
    %c0 = arith.constant 0 : index
    %c0_0 = arith.constant 0 : index
    %1 = vector.load %arg3[%c0, %c0_0] : memref<72x128xf32, #tpu.memory_space<vmem>>, vector<72x128xf32>
    %2 = arith.truncf %1 : vector<72x128xf32> to vector<72x128xbf16>
    %c0_1 = arith.constant 0 : index
    %c0_2 = arith.constant 0 : index
    %c0_3 = arith.constant 0 : index
    %3 = vector.load %arg4[%c0_1, %c0_2, %c0_3] : memref<1x128x128xbf16, #tpu.memory_space<vmem>>, vector<1x128x128xbf16>
    %4 = vector.shape_cast %3 : vector<1x128x128xbf16> to vector<128x128xbf16>
    %cst_4 = arith.constant dense<0.000000e+00> : vector<72x128xf32>
    %5 = tpu.matmul %2, %4, %cst_4 {dimension_numbers = #tpu.dot_dimension_numbers<[1], [0], [0], [1], [0, 0, 1, 1], [], []>} : vector<72x128xbf16>, vector<128x128xbf16>, vector<72x128xf32> -> vector<72x128xf32>
    %6 = arith.addf %0, %5 : vector<72x128xf32>
    %c0_5 = arith.constant 0 : index
    %c0_6 = arith.constant 0 : index
    %7 = vector.load %arg5[%c0_5, %c0_6] : memref<1x128xf32, #tpu.memory_space<vmem>>, vector<1x128xf32>
    %8 = vector.broadcast %7 : vector<1x128xf32> to vector<72x128xf32>
    %9 = arith.addf %6, %8 : vector<72x128xf32>
    %cst_7 = arith.constant 0.000000e+00 : f32
    %10 = vector.broadcast %cst_7 : f32 to vector<72x128xf32>
    %11 = arith.maximumf %9, %10 : vector<72x128xf32>
    %c0_8 = arith.constant 0 : index
    %c0_9 = arith.constant 0 : index
    %12 = vector.load %arg6[%c0_8, %c0_9] : memref<72x128xf32, #tpu.memory_space<vmem>>, vector<72x128xf32>
    tpu.vector_store %arg6[%c0_8, %c0_9], %11 {strides = array<i32>} : memref<72x128xf32, #tpu.memory_space<vmem>>, vector<72x128xf32>,
    return
  }
  func.func @transform_0(%arg0: i32, %arg1: i32, %arg2: i32) -> (i32, i32) {
    %c8_i32 = arith.constant 8 : i32
    %0 = arith.muli %arg0, %c8_i32 : i32
    %1 = arith.addi %0, %arg1 : i32
    %c0_i32 = arith.constant 0 : i32
    %c0_i32_0 = arith.constant 0 : i32
    return %1, %c0_i32 : i32, i32
  }
  func.func @transform_1(%arg0: i32, %arg1: i32, %arg2: i32) -> (i32, i32, i32) {
    %c0_i32 = arith.constant 0 : i32
    %c0_i32_0 = arith.constant 0 : i32
    %c0_i32_1 = arith.constant 0 : i32
    return %c0_i32, %c0_i32_0, %arg2 : i32, i32, i32
  }
  func.func @transform_2(%arg0: i32, %arg1: i32, %arg2: i32) -> (i32, i32) {
    %c0_i32 = arith.constant 0 : i32
    %c0_i32_0 = arith.constant 0 : i32
    return %c0_i32, %arg2 : i32, i32
  }
  func.func @transform_3(%arg0: i32, %arg1: i32, %arg2: i32) -> (i32, i32) {
    %c8_i32 = arith.constant 8 : i32
    %0 = arith.muli %arg0, %c8_i32 : i32
    %1 = arith.addi %0, %arg1 : i32
    %c0_i32 = arith.constant 0 : i32
    return %1, %arg2 : i32, i32
  }
}

</mosaic_0001>

<llo_original>
// kernel: tpu_custom_call.1
$region0: #{tpu_custom_call.1}
  #allocation0 [shape = 'u32[]', space=smem, size = 0x4, offset = 0x4, fixed_abs, tag = 'smem constant byte address 0x4 - core index']
  #allocation1 [shape = 'u32[144,128]{1,0:T(1,128)}', space=vmem, size = 0x12000, scoped, tag = 'internal scratch']
  %s0 = inlined_call_operand.hbm [shape: f32[1152,128], index: 0, kind: input, shape index: {}]
  %s1 = inlined_call_operand.hbm [shape: bf16[1,128,128], index: 1, kind: input, shape index: {}]
  %s2 = inlined_call_operand.vmem [shape: f32[1,128], index: 2, kind: input, shape index: {}]
  %s3 = inlined_call_operand.hbm [shape: f32[1152,128], index: 3, kind: output, shape index: {}]
  %s4 = sld [smem:[#allocation0]]
  $region53: #{tpu_custom_call.1} parent=0
    _
  %s6 = ssub.s32 1, %s4
  %s7 = scalar_select 0, %s6, %s4
  $region1: #{tpu_custom_call.1} parent=0
    #allocation2 [shape = 'u8[73728]{0}', space=vmem, size = 0x12000, scoped, tag = 'input window, operand 0']
    #allocation3 [shape = 's32[2]{0}', space=sflag, size = 0x8, scoped, tag = 'scoped memory for tpu_custom_call.1']
    #allocation4 [shape = 's32[2]{0}', space=sflag, size = 0x8, scoped, tag = 'scoped memory for tpu_custom_call.1']
    #allocation5 [shape = 'u8[32768]{0}', space=vmem, size = 0x8000, scoped, tag = 'input window, operand 1, single buffered']
    #allocation6 [shape = 's32[1]{0}', space=sflag, size = 0x4, scoped, tag = 'scoped memory for tpu_custom_call.1']
    #allocation7 [shape = 'u8[73728]{0}', space=vmem, size = 0x12000, scoped, tag = 'output window, operand 0']
    %8 = vsyncpa [#allocation3], 0
    %s9 = scalar_lea.sflag [#allocation3], 1
    %10 = vsyncpa %s9, 0
    %11 = vsyncpa [#allocation6], 0
    %12 = vsyncpa [#allocation4], 0
    %s13 = scalar_lea.sflag [#allocation4], 1
    %14 = vsyncpa %s13, 0
    loop: start=0, step=1, limit=18
    $region2: #{tpu_custom_call.1} parent=1 // loop_pre_header
      _
    $region3: #{tpu_custom_call.1} parent=1 // loop_header
      %s16 = sphi 0, %s20
      %p17 = scmp.ge.s32.totalorder %s16, 18
      %s23 = sphi 0, %s42
      %s24 = sphi 0, %s38
      %s25 = sphi 0, %s34
      %s26 = sphi 0, %s23
      %s27 = sphi 0, %s24
      %s28 = sphi 0, %s25
      %s29 = sphi 0, %s26
      %s30 = sphi 0, %s27
      %s31 = sphi 0, %s28
      %s49 = sphi 0, %s51
      %s52 = sphi 0, %s49
      %s53 = sphi 0, %s52
      %s69 = sphi 0, %s53
      %s75 = sphi 0, %s77
      %s78 = sphi 0, %s75
      %s79 = sphi 0, %s78
      %s95 = sphi 0, %s79
      %s101 = sphi 0, %s103
      %s104 = sphi 0, %s101
      %s105 = sphi 0, %s104
      %s121 = sphi 0, %s105
      %s133 = sphi 0, %s135
      %s136 = sphi 0, %s133
      %s137 = sphi 0, %s136
      %s153 = sphi 0, %s137
    $region4: #{tpu_custom_call.1} parent=1 // loop_header_branch
      %19 = sbr.rel (%p17) target = $region8
    $region5: #{tpu_custom_call.1} parent=1 // loop_body
      %s21 = ssub.s32 %s16, 1
      %s22 = ssub.s32 %s16, 2
      %s32 = sadd.s32 1, %s25
      %p33 = scmp.ge.s32.totalorder %s32, 1
      %s34 = scalar_select %p33, 0, %s32
      %s35 = sadd.s32 1, %s24
      %s36 = scalar_select %p33, %s35, %s24
      %p37 = scmp.ge.s32.totalorder %s36, 8
      %s38 = scalar_select %p37, 0, %s36
      %s39 = sadd.s32 1, %s23
      %s40 = scalar_select %p37, %s39, %s23
      %p41 = scmp.ge.s32.totalorder %s40, 2
      %s42 = scalar_select %p41, 0, %s40
      %s43 = smul.u32 %s23, 8
      %s44 = sadd.s32 %s43, %s24
      %s45 = smul.u32 %s42, 8
      %s46 = sadd.s32 %s45, %s38
      %s47 = ssub.s32 %s44, %s46
      %p48 = scmp.eq.s32.totalorder %s47, 0
      %s50 = sadd.s32 %s49, 1
      %s51 = scalar_select %p48, %s49, %s50
      %p54 = pneg %p48
      %p55 = scmp.eq.s32.totalorder %s16, 15
      %p56 = por %p54, %p55
      %p57 = scmp.ne.s32.totalorder %s49, %s52
      %p58 = scmp.eq.s32.totalorder %s16, 0
      %p59 = por %p57, %p58
      %p60 = scmp.ne.s32.totalorder %s49, %s52
      %p61 = scmp.eq.s32.totalorder %s21, 15
      %p62 = por %p60, %p61
      %p63 = scmp.ne.s32.totalorder %s52, %s53
      %p64 = scmp.eq.s32.totalorder %s21, 0
      %p65 = por %p63, %p64
      %p66 = scmp.ne.s32.totalorder %s52, %s53
      %p67 = scmp.eq.s32.totalorder %s22, 15
      %p68 = por %p66, %p67
      %p70 = scmp.ne.s32.totalorder %s53, %s69
      %p71 = scmp.eq.s32.totalorder %s22, 0
      %p72 = por %p70, %p71
      %s73 = ssub.s32 %s25, %s34
      %p74 = scmp.eq.s32.totalorder %s73, 0
      %s76 = sadd.s32 %s75, 1
      %s77 = scalar_select %p74, %s75, %s76
      %p80 = pneg %p74
      %p81 = scmp.eq.s32.totalorder %s16, 15
      %p82 = por %p80, %p81
      %p83 = scmp.ne.s32.totalorder %s75, %s78
      %p84 = scmp.eq.s32.totalorder %s16, 0
      %p85 = por %p83, %p84
      %p86 = scmp.ne.s32.totalorder %s75, %s78
      %p87 = scmp.eq.s32.totalorder %s21, 15
      %p88 = por %p86, %p87
      %p89 = scmp.ne.s32.totalorder %s78, %s79
      %p90 = scmp.eq.s32.totalorder %s21, 0
      %p91 = por %p89, %p90
      %p92 = scmp.ne.s32.totalorder %s78, %s79
      %p93 = scmp.eq.s32.totalorder %s22, 15
      %p94 = por %p92, %p93
      %p96 = scmp.ne.s32.totalorder %s79, %s95
      %p97 = scmp.eq.s32.totalorder %s22, 0
      %p98 = por %p96, %p97
      %s99 = ssub.s32 %s25, %s34
      %p100 = scmp.eq.s32.totalorder %s99, 0
      %s102 = sadd.s32 %s101, 1
      %s103 = scalar_select %p100, %s101, %s102
      %p106 = pneg %p100
      %p107 = scmp.eq.s32.totalorder %s16, 15
      %p108 = por %p106, %p107
      %p109 = scmp.ne.s32.totalorder %s101, %s104
      %p110 = scmp.eq.s32.totalorder %s16, 0
      %p111 = por %p109, %p110
      %p112 = scmp.ne.s32.totalorder %s101, %s104
      %p113 = scmp.eq.s32.totalorder %s21, 15
      %p114 = por %p112, %p113
      %p115 = scmp.ne.s32.totalorder %s104, %s105
      %p116 = scmp.eq.s32.totalorder %s21, 0
      %p117 = por %p115, %p116
      %p118 = scmp.ne.s32.totalorder %s104, %s105
      %p119 = scmp.eq.s32.totalorder %s22, 15
      %p120 = por %p118, %p119
      %p122 = scmp.ne.s32.totalorder %s105, %s121
      %p123 = scmp.eq.s32.totalorder %s22, 0
      %p124 = por %p122, %p123
      %s125 = smul.u32 %s23, 8
      %s126 = sadd.s32 %s125, %s24
      %s127 = smul.u32 %s42, 8
      %s128 = sadd.s32 %s127, %s38
      %s129 = ssub.s32 %s126, %s128
      %s130 = ssub.s32 %s25, %s34
      %s131 = sor.u32 %s129, %s130
      %p132 = scmp.eq.s32.totalorder %s131, 0
      %s134 = sadd.s32 %s133, 1
      %s135 = scalar_select %p132, %s133, %s134
      %p138 = pneg %p132
      %p139 = scmp.eq.s32.totalorder %s16, 15
      %p140 = por %p138, %p139
      %p141 = scmp.ne.s32.totalorder %s133, %s136
      %p142 = scmp.eq.s32.totalorder %s16, 0
      %p143 = por %p141, %p142
      %p144 = scmp.ne.s32.totalorder %s133, %s136
      %p145 = scmp.eq.s32.totalorder %s21, 15
      %p146 = por %p144, %p145
      %p147 = scmp.ne.s32.totalorder %s136, %s137
      %p148 = scmp.eq.s32.totalorder %s21, 0
      %p149 = por %p147, %p148
      %p150 = scmp.ne.s32.totalorder %s136, %s137
      %p151 = scmp.eq.s32.totalorder %s22, 15
      %p152 = por %p150, %p151
      %p154 = scmp.ne.s32.totalorder %s137, %s153
      %p155 = scmp.eq.s32.totalorder %s22, 0
      %p156 = por %p154, %p155
      %p157 = scmp.le.s32.totalorder 1, %s16
      %p158 = scmp.lt.s32.totalorder %s16, 17
      %p159 = pnand %p157, %p158
      %p160 = pneg %p159
      // Predicated region
      $region9: #{tpu_custom_call.1} parent=5 // pred_check
        _
      $region10: #{tpu_custom_call.1} parent=5 // pred_check_branch
        %162 = sbr.rel (%p159) target = $region12
      $region11: #{tpu_custom_call.1} parent=5 // pred_region
        %s163 = ssub.s32 %s16, 1
        // Predicated region
        $region13: #{tpu_custom_call.1} parent=11 // pred_check
          %p164 = pneg %p91
        $region14: #{tpu_custom_call.1} parent=11 // pred_check_branch
          %166 = sbr.rel (%p164) target = $region16
        $region15: #{tpu_custom_call.1} parent=11 // pred_region
          %s168 = ssub.s32 1024, 1024
          %169 = vsyncadd [#allocation6], %s168
          %s170 = smul.addr %s28, 64
          %s171 = scalar_lea.hbm %s1, %s170
          %s172 = sshll.u32 [#allocation5], 4
          %s173 = int_to_ptr.vmem [resolvable:$true] %s172
          %178 = dma.hbm_to_vmem [thread:$0]  %s171, 1024, %s173, [#allocation6], 64, 64, 4
        $region16: #{tpu_custom_call.1} parent=11 // pred_fallthru
          _
        // Predicated region
        $region17: #{tpu_custom_call.1} parent=11 // pred_check
          %p179 = pneg %p117
        $region18: #{tpu_custom_call.1} parent=11 // pred_check_branch
          %181 = sbr.rel (%p179) target = $region20
        $region19: #{tpu_custom_call.1} parent=11 // pred_region
          %p182 = scmp.lt.s32.totalorder %s28, 0
          %s183 = scalar_select %p182, %s28, 0
          %s184 = scalar_lea.vmem %s2, %s183
        $region20: #{tpu_custom_call.1} parent=11 // pred_fallthru
          _
      $region12: #{tpu_custom_call.1} parent=5 // pred_fallthru
        _
      %p185 = scmp.lt.s32.totalorder %s16, 16
      // Predicated region
      $region21: #{tpu_custom_call.1} parent=5 // pred_check
        %p186 = pneg %p185
      $region22: #{tpu_custom_call.1} parent=5 // pred_check_branch
        %188 = sbr.rel (%p186) target = $region24
      $region23: #{tpu_custom_call.1} parent=5 // pred_region
        // Predicated region
        $region25: #{tpu_custom_call.1} parent=23 // pred_check
          %p189 = pneg %p59
        $region26: #{tpu_custom_call.1} parent=23 // pred_check_branch
          %191 = sbr.rel (%p189) target = $region28
        $region27: #{tpu_custom_call.1} parent=23 // pred_region
          %s192 = sand.u32 %s49, 1
          %s193 = scalar_lea.sflag [#allocation3], %s192
          %s194 = sand.u32 %s49, 1
          %s195 = smul.addr %s194, 72
          %s196 = scalar_lea.vmem [#allocation2], %s195
          %s197 = smul.u32 %s23, 8
          %s198 = sadd.s32 %s197, %s24
          %s199 = smul.u32 9, %s198
          %s201 = ssub.s32 1152, 1152
          %202 = vsyncadd %s193, %s201
          %s203 = smul.addr %s199, 128
          %s204 = scalar_lea.hbm %s0, %s203
          %s205 = sshll.u32 %s196, 4
          %s206 = int_to_ptr.vmem [resolvable:$true] %s205
          %211 = dma.hbm_to_vmem [thread:$0]  %s204, 1152, %s206, %s193, 128, 128, 8
        $region28: #{tpu_custom_call.1} parent=23 // pred_fallthru
          _
      $region24: #{tpu_custom_call.1} parent=5 // pred_fallthru
        _
      %p212 = scmp.le.s32.totalorder 1, %s16
      %p213 = scmp.lt.s32.totalorder %s16, 17
      %p214 = pnand %p212, %p213
      %p215 = pneg %p214
      // Predicated region
      $region29: #{tpu_custom_call.1} parent=5 // pred_check
        _
      $region30: #{tpu_custom_call.1} parent=5 // pred_check_branch
        %217 = sbr.rel (%p214) target = $region32
      $region31: #{tpu_custom_call.1} parent=5 // pred_region
        %s218 = ssub.s32 %s16, 1
        %s219 = sand.u32 %s52, 1
        %s220 = scalar_lea.sflag [#allocation3], %s219
        %s221 = sand.u32 %s52, 1
        %s222 = smul.addr %s221, 72
        %s223 = scalar_lea.vmem [#allocation2], %s222
        // Predicated region
        $region33: #{tpu_custom_call.1} parent=31 // pred_check
          %p224 = pneg %p65
        $region34: #{tpu_custom_call.1} parent=31 // pred_check_branch
          %226 = sbr.rel (%p224) target = $region36
        $region35: #{tpu_custom_call.1} parent=31 // pred_region
          %227 = dma.done %s220, 1152
        $region36: #{tpu_custom_call.1} parent=31 // pred_fallthru
          _
        // Predicated region
        $region37: #{tpu_custom_call.1} parent=31 // pred_check
          %p228 = pneg %p91
        $region38: #{tpu_custom_call.1} parent=31 // pred_check_branch
          %230 = sbr.rel (%p228) target = $region40
        $region39: #{tpu_custom_call.1} parent=31 // pred_region
          %231 = dma.done [#allocation6], 1024
        $region40: #{tpu_custom_call.1} parent=31 // pred_fallthru
          _
        %s232 = sand.u32 %s52, 1
        %s233 = scalar_lea.sflag [#allocation3], %s232
        %s234 = sand.u32 %s52, 1
        %s235 = smul.addr %s234, 72
        %s236 = scalar_lea.vmem [#allocation2], %s235
        %p237 = pneg %p65
        %p238 = pneg %p62
        %p239 = pneg %p91
        %p240 = pneg %p88
        %p241 = scmp.lt.s32.totalorder %s28, 0
        %s242 = scalar_select %p241, %s28, 0
        %s243 = scalar_lea.vmem %s2, %s242
        %p244 = pneg %p117
        %p245 = pneg %p114
        %p246 = pneg %p149
        %p247 = pneg %p146
        %s248 = sand.u32 %s136, 1
        %s249 = scalar_lea.sflag [#allocation4], %s248
        %s250 = sand.u32 %s136, 1
        %s251 = smul.addr %s250, 72
        %s252 = scalar_lea.vmem [#allocation7], %s251
        %s253 = smul.u32 %s26, 8
        %s254 = sadd.s32 %s253, %s27
        %s255 = smul.u32 9, %s254
        %p256 = scmp.lt.s32.totalorder %s28, 0
        %s257 = scalar_select %p256, %s28, 0
        %s258 = scalar_lea.vmem %s2, %s257
        %s259 = smul.u32 %s26, 8
        %s260 = sadd.s32 %s259, %s27
        %s261 = smul.u32 9, %s260
        %v263 = vld [vmem:[%s223] sm:$0xff]
        %v264 = vld [vmem:[%s223 + $0x8] sm:$0xff]
        %v265 = vld [vmem:[%s223 + $0x10] sm:$0xff]
        %v266 = vld [vmem:[%s223 + $0x18] sm:$0xff]
        %v267 = vld [vmem:[%s223 + $0x20] sm:$0xff]
        %v268 = vld [vmem:[%s223 + $0x28] sm:$0xff]
        %v269 = vld [vmem:[%s223 + $0x30] sm:$0xff]
        %v270 = vld [vmem:[%s223 + $0x38] sm:$0xff]
        %v271 = vld [vmem:[%s223 + $0x40] sm:$0xff]
        %v272 = vpack.c.bf16 %v264, %v263
        %v273 = vpack.c.bf16 %v266, %v265
        %v274 = vpack.c.bf16 %v268, %v267
        %v275 = vpack.c.bf16 %v270, %v269
        %v276 = vpack.c.bf16 %v271, %v271
        %v277 = vld [vmem:[#allocation5] sm:$0xf]
        %v278 = vld [vmem:[#allocation5 + $0x4] sm:$0xf]
        %v279 = vld [vmem:[#allocation5 + $0x8] sm:$0xf]
        %v280 = vld [vmem:[#allocation5 + $0xc] sm:$0xf]
        %v281 = vld [vmem:[#allocation5 + $0x10] sm:$0xf]
        %v282 = vld [vmem:[#allocation5 + $0x14] sm:$0xf]
        %v283 = vld [vmem:[#allocation5 + $0x18] sm:$0xf]
        %v284 = vld [vmem:[#allocation5 + $0x1c] sm:$0xf]
        %v285 = vld [vmem:[#allocation5 + $0x20] sm:$0xf]
        %v286 = vld [vmem:[#allocation5 + $0x24] sm:$0xf]
        %v287 = vld [vmem:[#allocation5 + $0x28] sm:$0xf]
        %v288 = vld [vmem:[#allocation5 + $0x2c] sm:$0xf]
        %v289 = vld [vmem:[#allocation5 + $0x30] sm:$0xf]
        %v290 = vld [vmem:[#allocation5 + $0x34] sm:$0xf]
        %v291 = vld [vmem:[#allocation5 + $0x38] sm:$0xf]
        %v292 = vld [vmem:[#allocation5 + $0x3c] sm:$0xf]
        %v293 = vld [vmem:[%s258] sm:$0x1]
        %v295 = vlaneseq
        %v296 = vshrl.u32 %v295, 7
        %v297 = vsub.s32 0, %v296
        %v298 = vrot.slane %v293, %v297
        %v316 = vunpack.c.l.b16 %v277
        %v317 = vunpack.c.l.b16 %v278
        %v318 = vunpack.c.l.b16 %v279
        %v319 = vunpack.c.l.b16 %v280
        %v320 = vunpack.c.l.b16 %v281
        %v321 = vunpack.c.l.b16 %v282
        %v322 = vunpack.c.l.b16 %v283
        %v323 = vunpack.c.l.b16 %v284
        %v324 = vunpack.c.l.b16 %v285
        %v325 = vunpack.c.l.b16 %v286
        %v326 = vunpack.c.l.b16 %v287
        %v327 = vunpack.c.l.b16 %v288
        %v328 = vunpack.c.l.b16 %v289
        %v329 = vunpack.c.l.b16 %v290
        %v330 = vunpack.c.l.b16 %v291
        %v331 = vunpack.c.l.b16 %v292
        %v332 = vpack.c.b16 %v317, %v316
        %v333 = vpack.c.b16 %v319, %v318
        %v334 = vpack.c.b16 %v321, %v320
        %v335 = vpack.c.b16 %v323, %v322
        %v336 = vpack.c.b16 %v325, %v324
        %v337 = vpack.c.b16 %v327, %v326
        %v338 = vpack.c.b16 %v329, %v328
        %v339 = vpack.c.b16 %v331, %v330
        %348 = vmatprep.subr.bf16.mxu0 0
        %349 = vmatpush1.bf16.msra.mxu0 %v339
        %350 = vmatprep.subr.bf16.mxu0 0
        %351 = vmatpush1.bf16.msra.mxu0 %v338
        %352 = vmatprep.subr.bf16.mxu0 0
        %353 = vmatpush1.bf16.msra.mxu0 %v337
        %354 = vmatprep.subr.bf16.mxu0 0
        %355 = vmatpush1.bf16.msra.mxu0 %v336
        %356 = vmatprep.subr.bf16.mxu0 0
        %357 = vmatpush1.bf16.msra.mxu0 %v335
        %358 = vmatprep.subr.bf16.mxu0 0
        %359 = vmatpush1.bf16.msra.mxu0 %v334
        %360 = vmatprep.subr.bf16.mxu0 0
        %361 = vmatpush1.bf16.msra.mxu0 %v333
        %362 = vmatprep.subr.bf16.mxu0 0
        %363 = vmatpush1.bf16.msra.mxu0 %v332
        %364 = vmatprep.subr.bf16.mxu0 0
        %365 = vmatpush2.bf16.msra.mxu0 0
        %366 = vmatprep.subr.bf16.mxu0 0
        %367 = vmatpush2.bf16.msra.mxu0 0
        %368 = vmatprep.subr.bf16.mxu0 0
        %369 = vmatpush2.bf16.msra.mxu0 0
        %370 = vmatprep.subr.bf16.mxu0 0
        %371 = vmatpush2.bf16.msra.mxu0 0
        %372 = vmatprep.subr.bf16.mxu0 0
        %373 = vmatpush2.bf16.msra.mxu0 0
        %374 = vmatprep.subr.bf16.mxu0 0
        %375 = vmatpush2.bf16.msra.mxu0 0
        %376 = vmatprep.subr.bf16.mxu0 0
        %377 = vmatpush2.bf16.msra.mxu0 0
        %378 = vmatprep.subr.bf16.mxu0 0
        %379 = vmatpush2.bf16.msra.mxu0 0
        %380 = vmatprep.mubr.bf16.mxu0 0
        %381 = vmatmul.mubr.bf16.gmra.mxu0 %v272
        %v382 = vpop.f32.mrf.mxu0
        %v383 = vadd.f32 %v298, %v382
        %v384 = vpop.f32.mrf.mxu0
        %v385 = vpop.f32.mrf.mxu0
        %v386 = vadd.f32 %v298, %v385
        %v387 = vpop.f32.mrf.mxu0
        %388 = vmatprep.mubr.bf16.mxu0 0
        %389 = vmatmul.mubr.bf16.gmra.mxu0 %v273
        %v390 = vpop.f32.mrf.mxu0
        %v391 = vadd.f32 %v298, %v390
        %v392 = vpop.f32.mrf.mxu0
        %v393 = vpop.f32.mrf.mxu0
        %v394 = vadd.f32 %v298, %v393
        %v395 = vpop.f32.mrf.mxu0
        %396 = vmatprep.mubr.bf16.mxu0 0
        %397 = vmatmul.mubr.bf16.gmra.mxu0 %v274
        %v398 = vpop.f32.mrf.mxu0
        %v399 = vadd.f32 %v298, %v398
        %v400 = vpop.f32.mrf.mxu0
        %v401 = vpop.f32.mrf.mxu0
        %v402 = vadd.f32 %v298, %v401
        %v403 = vpop.f32.mrf.mxu0
        %404 = vmatprep.mubr.bf16.mxu0 0
        %405 = vmatmul.mubr.bf16.gmra.mxu0 %v275
        %v406 = vpop.f32.mrf.mxu0
        %v407 = vadd.f32 %v298, %v406
        %v408 = vpop.f32.mrf.mxu0
        %v409 = vpop.f32.mrf.mxu0
        %v410 = vadd.f32 %v298, %v409
        %v411 = vpop.f32.mrf.mxu0
        %412 = vmatprep.mubr.bf16.mxu0 0
        %413 = vmatmul.mubr.bf16.gmra.mxu0 %v276
        %v414 = vpop.f32.mrf.mxu0
        %v415 = vadd.f32 %v298, %v414
        %v416 = vpop.f32.mrf.mxu0
        %v417 = vpop.f32.mrf.mxu0
        %v418 = vpop.f32.mrf.mxu0
        %419 = vdwg.mxu0
        %v420 = vmax.f32 %v383, 0.0
        %v421 = vmax.f32 %v386, 0.0
        %v422 = vmax.f32 %v391, 0.0
        %v423 = vmax.f32 %v394, 0.0
        %v424 = vmax.f32 %v399, 0.0
        %v425 = vmax.f32 %v402, 0.0
        %v426 = vmax.f32 %v407, 0.0
        %v427 = vmax.f32 %v410, 0.0
        %v428 = vmax.f32 %v415, 0.0
        %429 = vst [vmem:[%s252] sm:$0xff] %v420
        %430 = vst [vmem:[%s252 + $0x8] sm:$0xff] %v421
        %431 = vst [vmem:[%s252 + $0x10] sm:$0xff] %v422
        %432 = vst [vmem:[%s252 + $0x18] sm:$0xff] %v423
        %433 = vst [vmem:[%s252 + $0x20] sm:$0xff] %v424
        %434 = vst [vmem:[%s252 + $0x28] sm:$0xff] %v425
        %435 = vst [vmem:[%s252 + $0x30] sm:$0xff] %v426
        %436 = vst [vmem:[%s252 + $0x38] sm:$0xff] %v427
        %437 = vst [vmem:[%s252 + $0x40] sm:$0xff] %v428
        %s438 = sand.u32 %s136, 1
        %s439 = scalar_lea.sflag [#allocation4], %s438
        %s440 = sand.u32 %s136, 1
        %s441 = smul.addr %s440, 72
        %s442 = scalar_lea.vmem [#allocation7], %s441
        // Predicated region
        $region41: #{tpu_custom_call.1} parent=31 // pred_check
          %p443 = pneg %p146
        $region42: #{tpu_custom_call.1} parent=31 // pred_check_branch
          %445 = sbr.rel (%p443) target = $region44
        $region43: #{tpu_custom_call.1} parent=31 // pred_region
          %s446 = smul.u32 %s26, 8
          %s447 = sadd.s32 %s446, %s27
          %s448 = smul.u32 9, %s447
          %s450 = ssub.s32 1152, 1152
          %451 = vsyncadd %s439, %s450
          %s452 = sadd.s32 %s28, %s448
          %s453 = smul.addr %s452, 128
          %s454 = scalar_lea.hbm %s3, %s453
          %s455 = sshll.u32 %s442, 4
          %s456 = int_to_ptr.vmem [resolvable:$true] %s455
          %461 = dma.vmem_to_hbm [thread:$0]  %s456, 1152, %s454, %s439, 128, 128, 8
        $region44: #{tpu_custom_call.1} parent=31 // pred_fallthru
          _
      $region32: #{tpu_custom_call.1} parent=5 // pred_fallthru
        _
      %p462 = scmp.le.s32.totalorder 2, %s16
      // Predicated region
      $region45: #{tpu_custom_call.1} parent=5 // pred_check
        %p463 = pneg %p462
      $region46: #{tpu_custom_call.1} parent=5 // pred_check_branch
        %465 = sbr.rel (%p463) target = $region48
      $region47: #{tpu_custom_call.1} parent=5 // pred_region
        %s466 = ssub.s32 %s16, 2
        // Predicated region
        $region49: #{tpu_custom_call.1} parent=47 // pred_check
          %p467 = pneg %p152
        $region50: #{tpu_custom_call.1} parent=47 // pred_check_branch
          %469 = sbr.rel (%p467) target = $region52
        $region51: #{tpu_custom_call.1} parent=47 // pred_region
          %s470 = sand.u32 %s137, 1
          %s471 = scalar_lea.sflag [#allocation4], %s470
          %s472 = sand.u32 %s137, 1
          %s473 = smul.addr %s472, 72
          %s474 = scalar_lea.vmem [#allocation7], %s473
          %475 = dma.done %s471, 1152
        $region52: #{tpu_custom_call.1} parent=47 // pred_fallthru
          _
      $region48: #{tpu_custom_call.1} parent=5 // pred_fallthru
        _
    $region6: #{tpu_custom_call.1} parent=1 // loop_footer
      %s20 = sadd.s32 1, %s16
    $region7: #{tpu_custom_call.1} parent=1 // loop_footer_branch
      %15 = sbr.rel target = $region3
    $region8: #{tpu_custom_call.1} parent=1 // loop_exit
      _
    %476 = vsyncpa [#allocation3], 1
    %s477 = scalar_lea.sflag [#allocation3], 1
    %478 = vsyncpa %s477, 1
    %479 = vsyncpa [#allocation6], 1
    %480 = vsyncpa [#allocation4], 1
    %s481 = scalar_lea.sflag [#allocation4], 1
    %482 = vsyncpa %s481, 1

</llo_original>
